<compile_context>
chip_gen: v5e
topology: v5e:2x2
jax: 0.10.0
libtpu: 0.0.40
codegen_flags: <defaults>
</compile_context>

<pallas_src>
import functools

import jax
import jax.numpy as jnp
from jax.experimental import pallas as pl
from jax.experimental.pallas import tpu as pltpu


def _simam_kernel(x_ref, o_ref, *, inv_hw, inv_n, e_lambda):
    # x_ref: (rt, hw) block in VMEM; each row is one (b, c) spatial map.
    # The ref's logical last dim is exactly hw, so reductions need no masking.
    xf = x_ref[...].astype(jnp.float32)  # no-op for f32 inputs

    mu = jnp.sum(xf, axis=-1, keepdims=True) * inv_hw        # (rt, 1)
    d = xf - mu
    d2 = d * d
    s = jnp.sum(d2, axis=-1, keepdims=True)                  # (rt, 1)
    denom = s * inv_n + e_lambda                              # (rt, 1)

    # Per-row reciprocal on the EUP slot + one Newton step (~f32 exact)
    # instead of a full-width per-element divide on the VALU.
    r = pl.reciprocal(denom, approx=True)
    r = r * (2.0 - denom * r)
    inv = r * 0.25                                            # folds the /4

    o_ref[...] = (d2 * inv + 0.5).astype(o_ref.dtype)


def _pick_row_tile(rows, hw, dtype_bytes, target_tile_bytes=2 << 20):
    """Returns (rt, rows_padded, needs_row_pad)."""
    # Byte-budget cap on the row tile, rounded down to a multiple of 8.
    cap = max(8, (target_tile_bytes // max(1, hw * dtype_bytes)) // 8 * 8)

    if rows % 8 == 0:
        # Prefer a divisor of rows that is a multiple of 8, <= cap, and (when
        # rows is big enough) leaves >= 2 grid steps for v7x's 2 TensorCores.
        limit = rows if rows < 16 else rows // 2
        limit = max(8, min(cap, limit) // 8 * 8)
        rt = 8
        for d in range(limit, 7, -8):
            if rows % d == 0:
                rt = d
                break
        return rt, rows, False

    # rows not a multiple of 8: a single full-dim block is allowed by the
    # (8,128)-or-full-dim rule; use it when the whole tensor is small.
    if rows * hw * dtype_bytes <= (4 << 20):
        return rows, rows, False

    # Rare fallback: pad rows to a tile multiple (lane axis stays unpadded).
    rt = max(8, min(cap, 512))
    rows_pad = -(-rows // rt) * rt
    return rt, rows_pad, True


def simam_forward(x, e_lambda=1e-4):
    """x: (B, C, H, W) array. Returns y with the same shape/dtype."""
    b, c, h, w = x.shape
    hw = h * w
    if hw <= 1:
        # n = H*W - 1 would be 0 -> division by zero in the reference math.
        raise ValueError("simam_forward requires H*W > 1")
    n = hw - 1
    rows = b * c
    dtype_bytes = jnp.dtype(x.dtype).itemsize

    rt, rows_pad, needs_row_pad = _pick_row_tile(rows, hw, dtype_bytes)

    x2d = x.reshape(rows, hw)
    if needs_row_pad:
        # Only the row axis is ever padded (rare: rows not a multiple of 8 and
        # tensor too large for a single block). Padded rows are zeros -> they
        # produce finite garbage (0.5) and are sliced off below.
        x2d = jnp.pad(x2d, ((0, rows_pad - rows), (0, 0)))

    kernel = functools.partial(
        _simam_kernel,
        inv_hw=1.0 / hw,
        inv_n=1.0 / n,
        e_lambda=float(e_lambda),
    )

    grid = (rows_pad // rt,)
    y2d = pl.pallas_call(
        kernel,
        out_shape=jax.ShapeDtypeStruct((rows_pad, hw), x.dtype),
        grid_spec=pltpu.PrefetchScalarGridSpec(
            num_scalar_prefetch=0,
            grid=grid,
            in_specs=[pl.BlockSpec((rt, hw), lambda i: (i, 0))],
            out_specs=pl.BlockSpec((rt, hw), lambda i: (i, 0)),
        ),
        compiler_params=pltpu.CompilerParams(
            # Rows are embarrassingly parallel -> shard across v7x's 2 TCs.
            dimension_semantics=("parallel",),
            # 2 MiB tiles * (2 in + 2 out buffers) + temps stays well under
            # this on every generation (v5e default scoped VMEM is only 16 MiB).
            vmem_limit_bytes=32 * 1024 * 1024,
        ),
        cost_estimate=pl.CostEstimate(
            flops=6 * rows * hw,
            transcendentals=rows,
            bytes_accessed=2 * rows * hw * dtype_bytes,
        ),
    )(x2d)

    if needs_row_pad:
        y2d = y2d[:rows, :]
    return y2d.reshape(b, c, h, w)


def _simam_ref(x, e_lambda):
    # Pure-JAX reference (same math as the PyTorch module).
    n = x.shape[2] * x.shape[3] - 1
    mu = jnp.mean(x, axis=(2, 3), keepdims=True)
    d2 = (x - mu) ** 2
    return d2 / (4.0 * (jnp.sum(d2, axis=(2, 3), keepdims=True) / n + e_lambda)) + 0.5


if __name__ == "__main__":
    key = jax.random.PRNGKey(0)

    # Primary small shape (aligned path: rows=8, hw=256).
    B, C, H, W = 2, 4, 16, 16
    x = jax.random.normal(key, (B, C, H, W), dtype=jnp.float32)
    y = jax.block_until_ready(simam_forward(x, e_lambda=1e-4))
    y_ref = _simam_ref(x, 1e-4)
    assert y.shape == (B, C, H, W)
    assert jnp.allclose(y, y_ref, atol=1e-4, rtol=1e-4)

    # Awkward shape: rows=15 (not a multiple of 8), hw=49 (not 128-aligned).
    # Handled with a single full-dim block: no padding, no slicing, no masks.
    x2 = jax.random.normal(jax.random.PRNGKey(0), (3, 5, 7, 7), dtype=jnp.float32)
    y2 = jax.block_until_ready(simam_forward(x2, e_lambda=1e-4))
    assert jnp.allclose(y2, _simam_ref(x2, 1e-4), atol=1e-4, rtol=1e-4)

    # Shape exercising the divisor-based row tiling (rows=64 -> rt=32, grid=2)
    # with an unaligned lane width (hw=196) handled by full-dim blocks.
    x3 = jax.random.normal(jax.random.PRNGKey(1), (4, 16, 14, 14), dtype=jnp.float32)
    y3 = jax.block_until_ready(simam_forward(x3, e_lambda=1e-4))
    assert jnp.allclose(y3, _simam_ref(x3, 1e-4), atol=1e-4, rtol=1e-4)

    print("KERNEL_OK")
</pallas_src>

<mosaic_0001>
module attributes {stable_mosaic.version = 11 : i64} {
  func.func @_simam_kernel(%arg0: i32, %arg1: memref<8x256xf32, #tpu.memory_space<vmem>>, %arg2: memref<8x256xf32, #tpu.memory_space<vmem>>) attributes {dimension_semantics = [#tpu.dimension_semantics<parallel>], iteration_bounds = array<i64: 1>, scalar_prefetch = 0 : i64, scratch_operands = 0 : i64, tpu.core_type = #tpu.core_type<tc>, window_params = [{transform_indices = @transform_0, window_bounds = array<i64: 8, 256>}, {transform_indices = @transform_1, window_bounds = array<i64: 8, 256>}]} {
    %c0 = arith.constant 0 : index
    %c0_0 = arith.constant 0 : index
    %0 = vector.load %arg1[%c0, %c0_0] : memref<8x256xf32, #tpu.memory_space<vmem>>, vector<8x256xf32>
    %cst = arith.constant dense<0.000000e+00> : vector<8xf32>
    %1 = vector.multi_reduction <add>, %0, %cst [1] : vector<8x256xf32> to vector<8xf32>
    %2 = vector.shape_cast %1 : vector<8xf32> to vector<8x1xf32>
    %cst_1 = arith.constant 3.906250e-03 : f32
    %3 = vector.broadcast %cst_1 : f32 to vector<8x1xf32>
    %4 = arith.mulf %2, %3 : vector<8x1xf32>
    %5 = vector.broadcast %4 : vector<8x1xf32> to vector<8x256xf32>
    %6 = arith.subf %0, %5 : vector<8x256xf32>
    %7 = arith.mulf %6, %6 : vector<8x256xf32>
    %cst_2 = arith.constant dense<0.000000e+00> : vector<8xf32>
    %8 = vector.multi_reduction <add>, %7, %cst_2 [1] : vector<8x256xf32> to vector<8xf32>
    %9 = vector.shape_cast %8 : vector<8xf32> to vector<8x1xf32>
    %cst_3 = arith.constant 0.00392156886 : f32
    %10 = vector.broadcast %cst_3 : f32 to vector<8x1xf32>
    %11 = arith.mulf %9, %10 : vector<8x1xf32>
    %cst_4 = arith.constant 9.99999974E-5 : f32
    %12 = vector.broadcast %cst_4 : f32 to vector<8x1xf32>
    %13 = arith.addf %11, %12 : vector<8x1xf32>
    %14 = tpu.reciprocal %13 {approx = true} : vector<8x1xf32> -> vector<8x1xf32>
    %15 = arith.mulf %13, %14 : vector<8x1xf32>
    %cst_5 = arith.constant 2.000000e+00 : f32
    %16 = vector.broadcast %cst_5 : f32 to vector<8x1xf32>
    %17 = arith.subf %16, %15 : vector<8x1xf32>
    %18 = arith.mulf %14, %17 : vector<8x1xf32>
    %cst_6 = arith.constant 2.500000e-01 : f32
    %19 = vector.broadcast %cst_6 : f32 to vector<8x1xf32>
    %20 = arith.mulf %18, %19 : vector<8x1xf32>
    %21 = vector.broadcast %20 : vector<8x1xf32> to vector<8x256xf32>
    %22 = arith.mulf %7, %21 : vector<8x256xf32>
    %cst_7 = arith.constant 5.000000e-01 : f32
    %23 = vector.broadcast %cst_7 : f32 to vector<8x256xf32>
    %24 = arith.addf %22, %23 : vector<8x256xf32>
    %c0_8 = arith.constant 0 : index
    %c0_9 = arith.constant 0 : index
    %25 = vector.load %arg2[%c0_8, %c0_9] : memref<8x256xf32, #tpu.memory_space<vmem>>, vector<8x256xf32>
    tpu.vector_store %arg2[%c0_8, %c0_9], %24 {strides = array<i32>} : memref<8x256xf32, #tpu.memory_space<vmem>>, vector<8x256xf32>,
    return
  }
  func.func @transform_0(%arg0: i32) -> (i32, i32) {
    %c0_i32 = arith.constant 0 : i32
    %c0_i32_0 = arith.constant 0 : i32
    return %arg0, %c0_i32 : i32, i32
  }
  func.func @transform_1(%arg0: i32) -> (i32, i32) {
    %c0_i32 = arith.constant 0 : i32
    %c0_i32_0 = arith.constant 0 : i32
    return %arg0, %c0_i32 : i32, i32
  }
}

</mosaic_0001>

<llo_original>
// kernel: tpu_custom_call.1
$region0: #{tpu_custom_call.1}
  #allocation0 [shape = 'u32[]', space=smem, size = 0x4, offset = 0x4, fixed_abs, tag = 'smem constant byte address 0x4 - core index']
  #allocation1 [shape = 'u32[72,128]{1,0:T(1,128)}', space=vmem, size = 0x9000, scoped, tag = 'internal scratch']
  %s0 = inlined_call_operand.hbm [shape: f32[8,256], index: 0, kind: input, shape index: {}]
  %s1 = inlined_call_operand.hbm [shape: f32[8,256], index: 1, kind: output, shape index: {}]
  %s2 = sld [smem:[#allocation0]]
  $region18: #{tpu_custom_call.1} parent=0
    _
  %s4 = ssub.s32 1, %s2
  %s5 = scalar_select 0, %s4, %s2
  $region1: #{tpu_custom_call.1} parent=0
    #allocation2 [shape = 'u8[8192]{0}', space=vmem, size = 0x2000, scoped, tag = 'input window, operand 0, single buffered']
    #allocation3 [shape = 's32[1]{0}', space=sflag, size = 0x4, scoped, tag = 'scoped memory for tpu_custom_call.1']
    #allocation4 [shape = 's32[1]{0}', space=sflag, size = 0x4, scoped, tag = 'scoped memory for tpu_custom_call.1']
    #allocation5 [shape = 'u8[8192]{0}', space=vmem, size = 0x2000, scoped, tag = 'output window, operand 0, single buffered']
    %6 = vsyncpa [#allocation3], 0
    %7 = vsyncpa [#allocation4], 0
    // Predicated region
    $region2: #{tpu_custom_call.1} parent=1 // pred_check
      _
    $region3: #{tpu_custom_call.1} parent=1 // pred_check_branch
      %9 = sbr.rel (0) target = $region5
    $region4: #{tpu_custom_call.1} parent=1 // pred_region
      %11 = vsyncadd [#allocation3], 0
      %s13 = sshll.u32 %s0, 4
      %s14 = int_to_ptr.hbm [resolvable:$true] %s13
      %s15 = sshll.u32 [#allocation2], 4
      %s16 = int_to_ptr.vmem [resolvable:$true] %s15
      %18 = dma.hbm_to_vmem [thread:$0]  %s14, 256, %s16, [#allocation3]
    $region5: #{tpu_custom_call.1} parent=1 // pred_fallthru
      _
    // Predicated region
    $region6: #{tpu_custom_call.1} parent=1 // pred_check
      _
    $region7: #{tpu_custom_call.1} parent=1 // pred_check_branch
      %20 = sbr.rel (0) target = $region9
    $region8: #{tpu_custom_call.1} parent=1 // pred_region
      %22 = dma.done [#allocation3], 256
    $region9: #{tpu_custom_call.1} parent=1 // pred_fallthru
      _
    %v23 = vld [vmem:[#allocation2] sm:$0xff]
    %v24 = vld [vmem:[#allocation2 + $0x8] sm:$0xff]
    %v25 = vadd.f32 %v23, %v24
    %26 = vadd.xlane.f32.xlu0 %v25
    %v27 = vpop.xlane.xlu0 %26
    %v28 = vmul.f32 %v27, 0.00390625
    %v29 = vsub.f32 %v23, %v28
    %v30 = vsub.f32 %v24, %v28
    %v31 = vmul.f32 %v29, %v29
    %v32 = vmul.f32 %v30, %v30
    %v33 = vadd.f32 %v31, %v32
    %34 = vadd.xlane.f32.xlu0 %v33
    %v35 = vpop.xlane.xlu0 %34
    %v36 = vmul.f32 %v35, 0.003921569
    %v37 = vadd.f32 %v36, 0.0001
    %v38 = vrcp.pop %v37
    %v39 = vmul.f32 %v37, %v38
    %v40 = vsub.f32 2.0, %v39
    %v41 = vmul.f32 %v38, %v40
    %v42 = vmul.f32 %v41, 0.25
    %v43 = vmul.f32 %v31, %v42
    %v44 = vmul.f32 %v32, %v42
    %v45 = vadd.f32 %v43, 0.5
    %v46 = vadd.f32 %v44, 0.5
    %47 = vst [vmem:[#allocation5] sm:$0xff] %v45
    %48 = vst [vmem:[#allocation5 + $0x8] sm:$0xff] %v46
    // Predicated region
    $region10: #{tpu_custom_call.1} parent=1 // pred_check
      _
    $region11: #{tpu_custom_call.1} parent=1 // pred_check_branch
      %50 = sbr.rel (0) target = $region13
    $region12: #{tpu_custom_call.1} parent=1 // pred_region
      %52 = vsyncadd [#allocation4], 0
      %s54 = sshll.u32 [#allocation5], 4
      %s55 = int_to_ptr.vmem [resolvable:$true] %s54
      %s56 = sshll.u32 %s1, 4
      %s57 = int_to_ptr.hbm [resolvable:$true] %s56
      %59 = dma.vmem_to_hbm [thread:$0]  %s55, 256, %s57, [#allocation4]
    $region13: #{tpu_custom_call.1} parent=1 // pred_fallthru
      _
    // Predicated region
    $region14: #{tpu_custom_call.1} parent=1 // pred_check
      _
    $region15: #{tpu_custom_call.1} parent=1 // pred_check_branch
      %61 = sbr.rel (0) target = $region17
    $region16: #{tpu_custom_call.1} parent=1 // pred_region
      %63 = dma.done [#allocation4], 256
    $region17: #{tpu_custom_call.1} parent=1 // pred_fallthru
      _
    %64 = vsyncpa [#allocation3], 1
    %65 = vsyncpa [#allocation4], 1

</llo_original>
